<compile_context>
chip_gen: v6e
topology: v6e:2x2x1
jax: 0.10.0
libtpu: 0.0.40
codegen_flags: <defaults>
</compile_context>

<pallas_src>
import functools

import jax
import jax.numpy as jnp
from jax.experimental import pallas as pl
from jax.experimental.pallas import tpu as pltpu

ALPHA = 0.25
GAMMA = 2  # compile-time constant; gamma == 2 -> modulation is u*u (no float pow)


def _round_up(x, m):
    return ((x + m - 1) // m) * m


def _focal_loss_kernel(logits_ref, labels_ref, out_ref, acc_ref, *,
                       n_true, tile_n, tiles_per_split):
    s = pl.program_id(0)          # batch split (parallel -> both TCs on v7x)
    i = pl.program_id(1)          # tile within split (arbitrary, carries acc)

    @pl.when(i == 0)
    def _():
        acc_ref[...] = jnp.zeros_like(acc_ref)

    x = logits_ref[...].astype(jnp.float32)                 # (TN, C) f32
    labels = labels_ref[...]                                 # (TN, 1) int32
    tn, c = x.shape

    # Numerically-stable log-sum-exp over classes (lane reduction).
    m = jnp.max(x, axis=-1, keepdims=True)                   # (TN, 1)
    lse = m + jnp.log(jnp.sum(jnp.exp(x - m), axis=-1, keepdims=True))

    # Target-class logit via one-hot compare + sum (no dynamic gather).
    col_ids = jax.lax.broadcasted_iota(jnp.int32, (tn, c), dimension=1)
    picked = jnp.sum(jnp.where(col_ids == labels, x, 0.0), axis=-1, keepdims=True)

    # Per-sample cross entropy (reduction='none' in the PyTorch reference).
    ce = lse - picked                                        # (TN, 1)

    # Focal modulation: alpha * (1 - pt)^gamma * ce, pt = exp(-ce); gamma==2 -> u*u.
    pt = jnp.exp(-ce)
    u = 1.0 - pt
    focal = (ALPHA * u * u) * ce                             # (TN, 1)

    # Mask rows past the true batch size.  Boundary blocks (and the clamped
    # duplicate tail tile of the last split) contain garbage rows -> select to 0
    # BEFORE the accumulate (select handles NaN/Inf safely).
    row_start = (s * tiles_per_split + i) * tile_n
    row_ids = row_start + jax.lax.broadcasted_iota(jnp.int32, (tn, 1), dimension=0)
    focal = jnp.where(row_ids < n_true, focal, 0.0)

    acc_ref[...] += jnp.sum(focal)

    @pl.when(i == tiles_per_split - 1)
    def _():
        # Lane-dense (1, 128) output block: partial sum in lane 0, zeros elsewhere,
        # so the wrapper can simply jnp.sum the whole output.
        lane = jax.lax.broadcasted_iota(jnp.int32, (1, 128), dimension=1)
        out_ref[...] = jnp.where(lane == 0, acc_ref[...], 0.0)


def focal_loss(logits, labels, *, tile_n=None, num_splits=None):
    """logits: (N, C) float (f32 or bf16), labels: (N,) int -> scalar focal loss."""
    n, c = logits.shape
    itemsize = jnp.dtype(logits.dtype).itemsize
    row_align = 16 if itemsize < 4 else 8       # bf16 packs 2 rows per sublane

    # VMEM capacity: v7x = 64 MiB physical, v5e/v6e = 128 MiB.
    try:
        vmem_cap = int(pltpu.get_tpu_info().vmem_capacity_bytes)
    except Exception:
        vmem_cap = 64 * 1024 * 1024              # conservative (v7x) fallback
    vmem_limit = min((vmem_cap * 3) // 4, 96 * 1024 * 1024)

    if tile_n is None:
        # Per-row VMEM cost:
        #   2 x logits block (double buffered, input dtype)
        # + 2 x (tile_n, 1) label block, lane-padded to 128 lanes (~512 B/row)
        # + ~4 f32 temporaries of the logits tile (upcast, exp, iota, one-hot sel).
        per_row = 2 * c * itemsize + 2 * 512 + 4 * c * 4
        budget = max(vmem_limit // 2, 8 * 1024 * 1024)
        tile_n = budget // per_row
    # Never tile past the (aligned) batch; keep sublane alignment.
    tile_n = min(int(tile_n), _round_up(n, row_align))
    tile_n = max(row_align, (tile_n // row_align) * row_align)

    num_tiles = pl.cdiv(n, tile_n)               # no jnp.pad: boundary block masked
    if num_splits is None:
        num_splits = 2 if num_tiles >= 2 else 1  # feed both TensorCores on v7x
    tiles_per_split = pl.cdiv(num_tiles, num_splits)

    labels2d = labels.astype(jnp.int32).reshape(n, 1)

    def block_map(s, i):
        # Clamp so a duplicated tail tile of the last split stays in bounds; its
        # rows are fully masked in-kernel (row_ids >= n).
        return (jnp.minimum(s * tiles_per_split + i, num_tiles - 1), 0)

    kernel = functools.partial(
        _focal_loss_kernel, n_true=n, tile_n=tile_n, tiles_per_split=tiles_per_split)

    cost = pl.CostEstimate(
        flops=6 * n * c,
        transcendentals=n * (c + 1),             # exp over the tile + exp(-ce)
        bytes_accessed=n * c * itemsize + n * 4 + num_splits * 128 * 4,
    )

    out = pl.pallas_call(
        kernel,
        out_shape=jax.ShapeDtypeStruct((1, num_splits * 128), jnp.float32),
        grid_spec=pltpu.PrefetchScalarGridSpec(
            num_scalar_prefetch=0,
            grid=(num_splits, tiles_per_split),
            in_specs=[
                # TODO(synk): class-tiled online-LSE (flash-style) for vocab-scale
                # C; block width is currently required to equal C.
                pl.BlockSpec((tile_n, c), block_map),
                pl.BlockSpec((tile_n, 1), block_map),
            ],
            out_specs=pl.BlockSpec((1, 128), lambda s, i: (0, s)),
            scratch_shapes=[pltpu.VMEM((1, 1), jnp.float32)],
        ),
        compiler_params=pltpu.CompilerParams(
            # Splits are independent (megacore split on v7x); tiles within a
            # split carry the accumulator -> sequential.
            dimension_semantics=("parallel", "arbitrary"),
            vmem_limit_bytes=int(vmem_limit),
        ),
        cost_estimate=cost,
    )(logits, labels2d)

    # Combine per-split partial sums and take the mean over the true batch size.
    return jnp.sum(out) / jnp.float32(n)


def focal_loss_ref(logits, labels):
    # Pure-JAX reference mirroring the PyTorch module.
    logp = jax.nn.log_softmax(logits.astype(jnp.float32), axis=-1)
    ce = -jnp.take_along_axis(logp, labels[:, None].astype(jnp.int32), axis=-1)[:, 0]
    pt = jnp.exp(-ce)
    return jnp.mean(ALPHA * (1.0 - pt) ** GAMMA * ce)


if __name__ == "__main__":
    key = jax.random.PRNGKey(0)
    k_logits, k_labels = jax.random.split(key)

    # Small synthetic shapes: batch=20 samples, 16 classes.  N is intentionally
    # not tile-aligned so the boundary-block masking path is exercised.
    N, C = 20, 16
    logits = jax.random.normal(k_logits, (N, C), dtype=jnp.float32)
    labels = jax.random.randint(k_labels, (N,), 0, C, dtype=jnp.int32)

    ref = focal_loss_ref(logits, labels)

    # Default tiling: single (row-aligned) tile, one split.
    loss = focal_loss(logits, labels)
    jax.block_until_ready(loss)
    assert jnp.allclose(loss, ref, rtol=1e-5, atol=1e-6), (loss, ref)

    # Forced tiny tiles: 3 logical tiles -> 2 splits x 2 tiles (one clamped,
    # fully-masked duplicate) plus a partial boundary block -> exercises the
    # masking, the carried accumulator and the parallel split axis.
    loss_tiled = focal_loss(logits, labels, tile_n=8)
    jax.block_until_ready(loss_tiled)
    assert jnp.allclose(loss_tiled, ref, rtol=1e-5, atol=1e-6), (loss_tiled, ref)

    # bf16 input path: logits DMA'd from HBM in bf16, upcast inside the kernel.
    logits_bf16 = logits.astype(jnp.bfloat16)
    loss_bf16 = focal_loss(logits_bf16, labels, tile_n=16)
    jax.block_until_ready(loss_bf16)
    ref_bf16 = focal_loss_ref(logits_bf16.astype(jnp.float32), labels)
    assert jnp.allclose(loss_bf16, ref_bf16, rtol=5e-3, atol=5e-3), (loss_bf16, ref_bf16)

    print("KERNEL_OK")
</pallas_src>

<mosaic_0001>
module attributes {stable_mosaic.version = 11 : i64} {
  func.func @_focal_loss_kernel(%arg0: i32, %arg1: i32, %arg2: memref<24x16xf32, #tpu.memory_space<vmem>>, %arg3: memref<24x1xi32, #tpu.memory_space<vmem>>, %arg4: memref<1x128xf32, #tpu.memory_space<vmem>>, %arg5: memref<1x1xf32, #tpu.memory_space<vmem>>) attributes {dimension_semantics = [#tpu.dimension_semantics<parallel>, #tpu.dimension_semantics<arbitrary>], iteration_bounds = array<i64: 1, 1>, scalar_prefetch = 0 : i64, scratch_operands = 1 : i64, tpu.core_type = #tpu.core_type<tc>, window_params = [{transform_indices = @transform_0, window_bounds = array<i64: 24, 16>}, {transform_indices = @transform_1, window_bounds = array<i64: 24, 1>}, {transform_indices = @transform_2, window_bounds = array<i64: 1, 128>}]} {
    %c0_i32 = arith.constant 0 : i32
    %0 = arith.cmpi eq, %arg1, %c0_i32 : i32
    %1 = arith.extui %0 : i1 to i32
    %c0_i32_0 = arith.constant 0 : i32
    %2 = arith.cmpi ne, %1, %c0_i32_0 : i32
    scf.if %2 {
      %cst_18 = arith.constant 0.000000e+00 : f32
      %52 = vector.broadcast %cst_18 : f32 to vector<1x1xf32>
      %c0_19 = arith.constant 0 : index
      %c0_20 = arith.constant 0 : index
      %53 = vector.load %arg5[%c0_19, %c0_20] : memref<1x1xf32, #tpu.memory_space<vmem>>, vector<1x1xf32>
      tpu.vector_store %arg5[%c0_19, %c0_20], %52 {strides = array<i32>} : memref<1x1xf32, #tpu.memory_space<vmem>>, vector<1x1xf32>,
    } else {
    }
    %c0 = arith.constant 0 : index
    %c0_1 = arith.constant 0 : index
    %3 = vector.load %arg2[%c0, %c0_1] : memref<24x16xf32, #tpu.memory_space<vmem>>, vector<24x16xf32>
    %c0_2 = arith.constant 0 : index
    %c0_3 = arith.constant 0 : index
    %4 = vector.load %arg3[%c0_2, %c0_3] : memref<24x1xi32, #tpu.memory_space<vmem>>, vector<24x1xi32>
    %cst = arith.constant dense<0xFF800000> : vector<24xf32>
    %5 = vector.multi_reduction <maximumf>, %3, %cst [1] : vector<24x16xf32> to vector<24xf32>
    %6 = vector.shape_cast %5 : vector<24xf32> to vector<24x1xf32>
    %7 = vector.broadcast %6 : vector<24x1xf32> to vector<24x16xf32>
    %8 = arith.subf %3, %7 : vector<24x16xf32>
    %9 = math.exp %8 : vector<24x16xf32>
    %cst_4 = arith.constant dense<0.000000e+00> : vector<24xf32>
    %10 = vector.multi_reduction <add>, %9, %cst_4 [1] : vector<24x16xf32> to vector<24xf32>
    %11 = vector.shape_cast %10 : vector<24xf32> to vector<24x1xf32>
    %12 = math.log %11 : vector<24x1xf32>
    %13 = arith.addf %6, %12 : vector<24x1xf32>
    %14 = tpu.iota {dimensions = array<i32: 1>} : vector<24x16xi32>
    %15 = vector.broadcast %4 : vector<24x1xi32> to vector<24x16xi32>
    %16 = arith.cmpi eq, %14, %15 : vector<24x16xi32>
    %cst_5 = arith.constant 0.000000e+00 : f32
    %17 = vector.broadcast %cst_5 : f32 to vector<24x16xf32>
    %18 = arith.select %16, %3, %17 : vector<24x16xi1>, vector<24x16xf32>
    %cst_6 = arith.constant dense<0.000000e+00> : vector<24xf32>
    %19 = vector.multi_reduction <add>, %18, %cst_6 [1] : vector<24x16xf32> to vector<24xf32>
    %20 = vector.shape_cast %19 : vector<24xf32> to vector<24x1xf32>
    %21 = arith.subf %13, %20 : vector<24x1xf32>
    %cst_7 = arith.constant 0.000000e+00 : f32
    %22 = vector.broadcast %cst_7 : f32 to vector<24x1xf32>
    %23 = arith.subf %22, %21 : vector<24x1xf32>
    %24 = math.exp %23 : vector<24x1xf32>
    %cst_8 = arith.constant 1.000000e+00 : f32
    %25 = vector.broadcast %cst_8 : f32 to vector<24x1xf32>
    %26 = arith.subf %25, %24 : vector<24x1xf32>
    %cst_9 = arith.constant 2.500000e-01 : f32
    %27 = vector.broadcast %cst_9 : f32 to vector<24x1xf32>
    %28 = arith.mulf %27, %26 : vector<24x1xf32>
    %29 = arith.mulf %28, %26 : vector<24x1xf32>
    %30 = arith.mulf %29, %21 : vector<24x1xf32>
    %c1_i32 = arith.constant 1 : i32
    %31 = arith.muli %arg0, %c1_i32 : i32
    %32 = arith.addi %31, %arg1 : i32
    %c24_i32 = arith.constant 24 : i32
    %33 = arith.muli %32, %c24_i32 : i32
    %34 = tpu.iota {dimensions = array<i32: 0>} : vector<24x1xi32>
    %35 = vector.broadcast %33 : i32 to vector<24x1xi32>
    %36 = arith.addi %35, %34 : vector<24x1xi32>
    %c20_i32 = arith.constant 20 : i32
    %37 = vector.broadcast %c20_i32 : i32 to vector<24x1xi32>
    %38 = arith.cmpi slt, %36, %37 : vector<24x1xi32>
    %cst_10 = arith.constant 0.000000e+00 : f32
    %39 = vector.broadcast %cst_10 : f32 to vector<24x1xf32>
    %40 = arith.select %38, %30, %39 : vector<24x1xi1>, vector<24x1xf32>
    %c0_11 = arith.constant 0 : index
    %c0_12 = arith.constant 0 : index
    %41 = vector.load %arg5[%c0_11, %c0_12] : memref<1x1xf32, #tpu.memory_space<vmem>>, vector<1x1xf32>
    %42 = vector.shape_cast %40 : vector<24x1xf32> to vector<1x24x1xf32>
    %cst_13 = arith.constant dense<0.000000e+00> : vector<1xf32>
    %43 = vector.multi_reduction <add>, %42, %cst_13 [1, 2] : vector<1x24x1xf32> to vector<1xf32>
    %44 = vector.shape_cast %43 : vector<1xf32> to vector<1x1x1xf32>
    %45 = vector.extract %44[0, 0, 0] : f32 from vector<1x1x1xf32>
    %46 = vector.broadcast %45 : f32 to vector<1x1xf32>
    %47 = arith.addf %41, %46 : vector<1x1xf32>
    %c0_14 = arith.constant 0 : index
    %c0_15 = arith.constant 0 : index
    %48 = vector.load %arg5[%c0_14, %c0_15] : memref<1x1xf32, #tpu.memory_space<vmem>>, vector<1x1xf32>
    tpu.vector_store %arg5[%c0_14, %c0_15], %47 {strides = array<i32>} : memref<1x1xf32, #tpu.memory_space<vmem>>, vector<1x1xf32>,
    %c0_i32_16 = arith.constant 0 : i32
    %49 = arith.cmpi eq, %arg1, %c0_i32_16 : i32
    %50 = arith.extui %49 : i1 to i32
    %c0_i32_17 = arith.constant 0 : i32
    %51 = arith.cmpi ne, %50, %c0_i32_17 : i32
    scf.if %51 {
      %52 = tpu.iota {dimensions = array<i32: 1>} : vector<1x128xi32>
      %c0_i32_18 = arith.constant 0 : i32
      %53 = vector.broadcast %c0_i32_18 : i32 to vector<1x128xi32>
      %54 = arith.cmpi eq, %52, %53 : vector<1x128xi32>
      %c0_19 = arith.constant 0 : index
      %c0_20 = arith.constant 0 : index
      %55 = vector.load %arg5[%c0_19, %c0_20] : memref<1x1xf32, #tpu.memory_space<vmem>>, vector<1x1xf32>
      %cst_21 = arith.constant 0.000000e+00 : f32
      %56 = vector.shape_cast %55 : vector<1x1xf32> to vector<1x1xf32>
      %57 = vector.broadcast %56 : vector<1x1xf32> to vector<1x128xf32>
      %58 = vector.broadcast %cst_21 : f32 to vector<1x128xf32>
      %59 = arith.select %54, %57, %58 : vector<1x128xi1>, vector<1x128xf32>
      %c0_22 = arith.constant 0 : index
      %c0_23 = arith.constant 0 : index
      %60 = vector.load %arg4[%c0_22, %c0_23] : memref<1x128xf32, #tpu.memory_space<vmem>>, vector<1x128xf32>
      tpu.vector_store %arg4[%c0_22, %c0_23], %59 {strides = array<i32>} : memref<1x128xf32, #tpu.memory_space<vmem>>, vector<1x128xf32>,
    } else {
    }
    return
  }
  func.func @transform_0(%arg0: i32, %arg1: i32) -> (i32, i32) {
    %c1_i32 = arith.constant 1 : i32
    %0 = arith.muli %arg0, %c1_i32 : i32
    %1 = arith.addi %0, %arg1 : i32
    %c0_i32 = arith.constant 0 : i32
    %2 = arith.minsi %1, %c0_i32 : i32
    %c0_i32_0 = arith.constant 0 : i32
    %c0_i32_1 = arith.constant 0 : i32
    return %2, %c0_i32_0 : i32, i32
  }
  func.func @transform_1(%arg0: i32, %arg1: i32) -> (i32, i32) {
    %c1_i32 = arith.constant 1 : i32
    %0 = arith.muli %arg0, %c1_i32 : i32
    %1 = arith.addi %0, %arg1 : i32
    %c0_i32 = arith.constant 0 : i32
    %2 = arith.minsi %1, %c0_i32 : i32
    %c0_i32_0 = arith.constant 0 : i32
    %c0_i32_1 = arith.constant 0 : i32
    return %2, %c0_i32_0 : i32, i32
  }
  func.func @transform_2(%arg0: i32, %arg1: i32) -> (i32, i32) {
    %c0_i32 = arith.constant 0 : i32
    %c0_i32_0 = arith.constant 0 : i32
    return %c0_i32, %arg0 : i32, i32
  }
}

</mosaic_0001>

<llo_original>
// kernel: tpu_custom_call.1
$region0: #{tpu_custom_call.1}
  #allocation0 [shape = 'u32[]', space=smem, size = 0x4, offset = 0x4, fixed_abs, tag = 'smem constant byte address 0x4 - core index']
  #allocation1 [shape = 'u32[144,128]{1,0:T(1,128)}', space=vmem, size = 0x12000, scoped, tag = 'internal scratch']
  #allocation2 [shape = 'f32[1,1]{1,0:T(1,128)}', space=vmem, size = 0x200, scoped, tag = 'scratch operand']
  %s0 = inlined_call_operand.vmem [shape: f32[20,16], index: 0, kind: input, shape index: {}]
  %s1 = inlined_call_operand.vmem [shape: s32[20,1], index: 1, kind: input, shape index: {}]
  %s2 = inlined_call_operand.hbm [shape: f32[1,128], index: 2, kind: output, shape index: {}]
  %s3 = sld [smem:[#allocation0]]
  $region26: #{tpu_custom_call.1} parent=0
    _
  %s5 = ssub.s32 1, %s3
  %s6 = scalar_select 0, %s5, %s3
  $region1: #{tpu_custom_call.1} parent=0
    #allocation3 [shape = 'u8[512]{0}', space=vmem, size = 0x400, scoped, tag = 'output window, operand 0, single buffered']
    #allocation4 [shape = 's32[1]{0}', space=sflag, size = 0x4, scoped, tag = 'scoped memory for tpu_custom_call.1']
    %7 = vsyncpa [#allocation4], 0
    // Predicated region
    $region2: #{tpu_custom_call.1} parent=1 // pred_check
      _
    $region3: #{tpu_custom_call.1} parent=1 // pred_check_branch
      %9 = sbr.rel (0) target = $region5
    $region4: #{tpu_custom_call.1} parent=1 // pred_region
      %s10 = sadd.s32 0, 0
      %p11 = scmp.lt.s32.totalorder %s10, 0
      %s12 = scalar_select %p11, %s10, 0
      %s13 = smul.u32 3, %s12
      %p14 = scmp.lt.s32.totalorder %s13, 2
      %s15 = scalar_select %p14, %s13, 2
      %s16 = smul.addr %s15, 8
      %s17 = scalar_lea.vmem %s0, %s16
      %s18 = sadd.s32 0, 0
      %p19 = scmp.lt.s32.totalorder %s18, 0
      %s20 = scalar_select %p19, %s18, 0
      %s21 = smul.u32 3, %s20
    $region5: #{tpu_custom_call.1} parent=1 // pred_fallthru
      _
    // Predicated region
    $region6: #{tpu_custom_call.1} parent=1 // pred_check
      _
    $region7: #{tpu_custom_call.1} parent=1 // pred_check_branch
      %23 = sbr.rel (0) target = $region9
    $region8: #{tpu_custom_call.1} parent=1 // pred_region
      %s24 = sadd.s32 0, 0
      %p25 = scmp.lt.s32.totalorder %s24, 0
      %s26 = scalar_select %p25, %s24, 0
      %s27 = smul.u32 3, %s26
      %p28 = scmp.lt.s32.totalorder %s27, 2
      %s29 = scalar_select %p28, %s27, 2
      %s30 = smul.addr %s29, 8
      %s31 = scalar_lea.vmem %s1, %s30
      %s32 = sadd.s32 0, 0
      %p33 = scmp.lt.s32.totalorder %s32, 0
      %s34 = scalar_select %p33, %s32, 0
      %s35 = smul.u32 3, %s34
    $region9: #{tpu_custom_call.1} parent=1 // pred_fallthru
      _
    %s36 = sadd.s32 0, 0
    %p37 = scmp.lt.s32.totalorder %s36, 0
    %s38 = scalar_select %p37, %s36, 0
    %s39 = smul.u32 3, %s38
    %p40 = scmp.lt.s32.totalorder %s39, 2
    %s41 = scalar_select %p40, %s39, 2
    %s42 = smul.addr %s41, 8
    %s43 = scalar_lea.vmem %s0, %s42
    %s44 = sadd.s32 0, 0
    %p45 = scmp.lt.s32.totalorder %s44, 0
    %s46 = scalar_select %p45, %s44, 0
    %s47 = smul.u32 3, %s46
    %p48 = scmp.lt.s32.totalorder %s47, 2
    %s49 = scalar_select %p48, %s47, 2
    %s50 = smul.addr %s49, 8
    %s51 = scalar_lea.vmem %s1, %s50
    %s52 = sadd.s32 0, 0
    %p53 = scmp.lt.s32.totalorder %s52, 0
    %s54 = scalar_select %p53, %s52, 0
    %s55 = smul.u32 3, %s54
    %p56 = scmp.lt.s32.totalorder %s55, 2
    %s57 = scalar_select %p56, %s55, 2
    %s58 = smul.addr %s57, 8
    %s59 = scalar_lea.vmem %s0, %s58
    %s60 = sadd.s32 0, 0
    %p61 = scmp.lt.s32.totalorder %s60, 0
    %s62 = scalar_select %p61, %s60, 0
    %s63 = smul.u32 3, %s62
    %s64 = sadd.s32 0, 0
    %p65 = scmp.lt.s32.totalorder %s64, 0
    %s66 = scalar_select %p65, %s64, 0
    %s67 = smul.u32 3, %s66
    %p68 = scmp.lt.s32.totalorder %s67, 2
    %s69 = scalar_select %p68, %s67, 2
    %s70 = smul.addr %s69, 8
    %s71 = scalar_lea.vmem %s1, %s70
    %s72 = sadd.s32 0, 0
    %p73 = scmp.lt.s32.totalorder %s72, 0
    %s74 = scalar_select %p73, %s72, 0
    %s75 = smul.u32 3, %s74
    %p76 = scmp.eq.s32.totalorder 0, 0
    // Predicated region
    $region10: #{tpu_custom_call.1} parent=1 // pred_check
      %p77 = pneg %p76
    $region11: #{tpu_custom_call.1} parent=1 // pred_check_branch
      %79 = sbr.rel (%p77) target = $region13
    $region12: #{tpu_custom_call.1} parent=1 // pred_region
      %vm80 = vcmask 0
      %81 = vst.msk [vmem:[#allocation2] sm:$0x1] %vm80, 0.0
    $region13: #{tpu_custom_call.1} parent=1 // pred_fallthru
      _
    %v82 = vld [vmem:[%s59] sm:$0xff]
    %v83 = vld [vmem:[%s59 + $0x8] sm:$0xff]
    %v84 = vld [vmem:[%s59 + $0x10] sm:$0xff]
    %v85 = vld [vmem:[%s71] sm:$0xff]
    %v86 = vld [vmem:[%s71 + $0x8] sm:$0xff]
    %v87 = vld [vmem:[%s71 + $0x10] sm:$0xff]
    %vm88 = vcmask 130048
    %v89 = vsel %vm88, %v82, -inf
    %90 = vmax.xlane.f32.xlu0 %v89
    %v91 = vpop.xlane.xlu0 %90
    %v92 = vsel %vm88, %v83, -inf
    %93 = vmax.xlane.f32.xlu0 %v92
    %v94 = vpop.xlane.xlu0 %93
    %v95 = vsel %vm88, %v84, -inf
    %96 = vmax.xlane.f32.xlu0 %v95
    %v97 = vpop.xlane.xlu0 %96
    %v98 = vsub.f32 %v82, %v91
    %v99 = vsub.f32 %v83, %v94
    %v100 = vsub.f32 %v84, %v97
    %v101 = vmul.f32 %v98, 1.442695
    %v102 = vpow.pop %v101
    %v103 = vmul.f32 %v99, 1.442695
    %v104 = vpow.pop %v103
    %v105 = vmul.f32 %v100, 1.442695
    %v106 = vpow.pop %v105
    %v107 = vsel %vm88, %v102, 0.0
    %108 = vadd.xlane.f32.xlu0 %v107
    %v109 = vpop.xlane.xlu0 %108
    %v110 = vsel %vm88, %v104, 0.0
    %111 = vadd.xlane.f32.xlu0 %v110
    %v112 = vpop.xlane.xlu0 %111
    %v113 = vsel %vm88, %v106, 0.0
    %114 = vadd.xlane.f32.xlu0 %v113
    %v115 = vpop.xlane.xlu0 %114
    %v116 = vlog2.pop %v109
    %v117 = vmul.f32 %v116, 0.6931472
    %v118 = vlog2.pop %v112
    %v119 = vmul.f32 %v118, 0.6931472
    %v120 = vlog2.pop %v115
    %v121 = vmul.f32 %v120, 0.6931472
    %v122 = vadd.f32 %v91, %v117
    %v123 = vadd.f32 %v94, %v119
    %v124 = vadd.f32 %v97, %v121
    %v125 = vlaneseq
    %v126 = vand.u32 %v125, 127
    %127 = vset.pattern.permute.xlu0 0
    %128 = vperm.xlu0 %127, %v85
    %v129 = vpop.permute.xlu0 %128
    %130 = vset.pattern.permute.xlu0 0
    %131 = vperm.xlu0 %130, %v86
    %v132 = vpop.permute.xlu0 %131
    %133 = vset.pattern.permute.xlu0 0
    %134 = vperm.xlu0 %133, %v87
    %v135 = vpop.permute.xlu0 %134
    %vm136 = vcmp.eq.s32.totalorder %v126, %v129
    %vm137 = vcmp.eq.s32.totalorder %v126, %v132
    %vm138 = vcmp.eq.s32.totalorder %v126, %v135
    %v139 = vsel %vm136, %v82, 0.0
    %v140 = vsel %vm137, %v83, 0.0
    %v141 = vsel %vm138, %v84, 0.0
    %v142 = vsel %vm88, %v139, 0.0
    %143 = vadd.xlane.f32.xlu0 %v142
    %v144 = vpop.xlane.xlu0 %143
    %v145 = vsel %vm88, %v140, 0.0
    %146 = vadd.xlane.f32.xlu0 %v145
    %v147 = vpop.xlane.xlu0 %146
    %v148 = vsel %vm88, %v141, 0.0
    %149 = vadd.xlane.f32.xlu0 %v148
    %v150 = vpop.xlane.xlu0 %149
    %v151 = vsub.f32 %v122, %v144
    %v152 = vsub.f32 %v123, %v147
    %v153 = vsub.f32 %v124, %v150
    %v154 = vsub.f32 0.0, %v151
    %v155 = vsub.f32 0.0, %v152
    %v156 = vsub.f32 0.0, %v153
    %v157 = vmul.f32 %v154, 1.442695
    %v158 = vpow.pop %v157
    %v159 = vmul.f32 %v155, 1.442695
    %v160 = vpow.pop %v159
    %v161 = vmul.f32 %v156, 1.442695
    %v162 = vpow.pop %v161
    %v163 = vsub.f32 1.0, %v158
    %v164 = vsub.f32 1.0, %v160
    %v165 = vsub.f32 1.0, %v162
    %v166 = vmul.f32 %v163, 0.25
    %v167 = vmul.f32 %v164, 0.25
    %v168 = vmul.f32 %v165, 0.25
    %v169 = vmul.f32 %v166, %v163
    %v170 = vmul.f32 %v167, %v164
    %v171 = vmul.f32 %v168, %v165
    %v172 = vmul.f32 %v169, %v151
    %v173 = vmul.f32 %v170, %v152
    %v174 = vmul.f32 %v171, %v153
    %s175 = sadd.s32 0, 0
    %s176 = smul.u32 %s175, 24
    %v177 = vlaneseq
    %v178 = vshrl.u32 %v177, 7
    %v179 = vadd.s32 %v178, 8
    %v180 = vadd.s32 %v178, 16
    %v181 = vstv %s176
    %v182 = vadd.s32 %v181, %v178
    %v183 = vadd.s32 %v181, %v179
    %v184 = vadd.s32 %v181, %v180
    %vm185 = vcmp.lt.s32.totalorder %v182, 20
    %vm186 = vcmp.lt.s32.totalorder %v183, 20
    %vm187 = vcmp.lt.s32.totalorder %v184, 20
    %v188 = vsel %vm185, %v172, 0.0
    %v189 = vsel %vm186, %v173, 0.0
    %v190 = vsel %vm187, %v174, 0.0
    %v191 = vld [vmem:[#allocation2] sm:$0x1]
    %vm192 = vcmask 7168
    %v193 = vsel %vm192, %v188, 0.0
    %v194 = vsel %vm192, %v189, 0.0
    %v195 = vadd.f32 %v193, %v194
    %v196 = vsel %vm192, %v190, 0.0
    %v197 = vadd.f32 %v195, %v196
    %198 = vadd.xlane.f32.xlu0 %v197
    %v199 = vpop.xlane.xlu0 %198
    %v200 = vrot.slane %v199, 4
    %v201 = vadd.f32 %v199, %v200
    %v202 = vrot.slane %v201, 2
    %v203 = vadd.f32 %v201, %v202
    %v204 = vrot.slane %v203, 1
    %v205 = vadd.f32 %v203, %v204
    %s206 = vtos %v205
    %v207 = vstv %s206
    %v208 = vadd.f32 %v191, %v207
    %vm209 = vcmask 0
    %210 = vst.msk [vmem:[#allocation2] sm:$0x1] %vm209, %v208
    // Predicated region
    $region14: #{tpu_custom_call.1} parent=1 // pred_check
      %p211 = pneg %p76
    $region15: #{tpu_custom_call.1} parent=1 // pred_check_branch
      %213 = sbr.rel (%p211) target = $region17
    $region16: #{tpu_custom_call.1} parent=1 // pred_region
      %vm214 = vcmp.eq.s32.totalorder %v126, 0
      %v215 = vld [vmem:[#allocation2] sm:$0x1]
      %217 = vset.pattern.permute.xlu0 0
      %218 = vperm.xlu0 %217, %v215
      %v219 = vpop.permute.xlu0 %218
      %v221 = vlaneseq
      %v222 = vshrl.u32 %v221, 7
      %v223 = vsub.s32 0, %v222
      %v224 = vrot.slane %v219, %v223
      %v225 = vsel %vm214, %v224, 0.0
      %226 = vst [vmem:[#allocation3] sm:$0x1] %v225
    $region17: #{tpu_custom_call.1} parent=1 // pred_fallthru
      _
    // Predicated region
    $region18: #{tpu_custom_call.1} parent=1 // pred_check
      _
    $region19: #{tpu_custom_call.1} parent=1 // pred_check_branch
      %228 = sbr.rel (0) target = $region21
    $region20: #{tpu_custom_call.1} parent=1 // pred_region
      %s230 = ssub.s32 16, 16
      %231 = vsyncadd [#allocation4], %s230
      %s233 = sshll.u32 [#allocation3], 4
      %s234 = int_to_ptr.vmem [resolvable:$true] %s233
      %236 = dma.vmem_to_hbm [thread:$0]  %s234, 16, %s2, [#allocation4]
    $region21: #{tpu_custom_call.1} parent=1 // pred_fallthru
      _
    // Predicated region
    $region22: #{tpu_custom_call.1} parent=1 // pred_check
      _
    $region23: #{tpu_custom_call.1} parent=1 // pred_check_branch
      %238 = sbr.rel (0) target = $region25
    $region24: #{tpu_custom_call.1} parent=1 // pred_region
      %239 = dma.done [#allocation4], 16
    $region25: #{tpu_custom_call.1} parent=1 // pred_fallthru
      _
    %240 = vsyncpa [#allocation4], 1

</llo_original>
